<compile_context>
chip_gen: v6e
topology: v6e:2x2x1
jax: 0.10.0
libtpu: 0.0.40
codegen_flags: <defaults>
</compile_context>

<pallas_src>
import functools
import math

import jax
import jax.numpy as jnp
from jax.experimental import pallas as pl
from jax.experimental.pallas import tpu as pltpu

LN_EPS = 1e-5                        # GPT-2 layer_norm_epsilon default
_GELU_C = math.sqrt(2.0 / math.pi)   # GPT-2 "gelu_new" tanh constant
NEG_BIG = -1e30                      # finite "-inf" for causal masking
VMEM_LIMIT = 48 * 1024 * 1024        # scoped-VMEM cap with headroom (safe on v7x 64 MiB)


# ------------------------------ tiling helpers -------------------------------

def _round_up(x, m):
    return ((x + m - 1) // m) * m


def _choose_tile(dim, target):
    """Return (tile, padded_dim): full dim if it fits, else a 128-multiple divisor close
    to target (no padding), else pad dim up to a multiple of target (lane-dense tiles)."""
    if dim <= target:
        return dim, dim
    t = (target // 128) * 128
    floor = max(128, t // 2)
    while t >= floor:
        if dim % t == 0:
            return t, dim
        t -= 128
    t = (target // 128) * 128
    return t, _round_up(dim, t)


def _pick_seq_tile(s, target):
    """Sequence tile: multiple-of-128 divisor of S if possible, else full S."""
    if s <= target:
        return s
    t = (target // 128) * 128
    while t >= 128:
        if s % t == 0:
            return t
        t -= 128
    return s


# ----------------------------- Pallas kernels -------------------------------

def _ln_dense_kernel(x_ref, g_ref, b_ref, w_ref, *rest, activation, has_bias):
    """Fused LayerNorm(x) @ W (+ bias) (+ GELU).  K (= model dim) is unblocked.
    The normalized activation is cached in xn_ref and reused for every N tile."""
    if has_bias:
        bias_ref, o_ref, xn_ref = rest
    else:
        o_ref, xn_ref = rest
        bias_ref = None

    @pl.when(pl.program_id(1) == 0)
    def _():
        x = x_ref[...].astype(jnp.float32)
        mu = jnp.mean(x, axis=-1, keepdims=True)
        ex2 = jnp.mean(x * x, axis=-1, keepdims=True)
        var = ex2 - mu * mu                              # single-pass stats
        xn = (x - mu) * jax.lax.rsqrt(var + LN_EPS) * g_ref[...] + b_ref[...]
        xn_ref[...] = xn.astype(jnp.bfloat16)

    y = jnp.dot(xn_ref[...], w_ref[...].astype(jnp.bfloat16),
                preferred_element_type=jnp.float32)
    if has_bias:
        y = y + bias_ref[...]
    if activation == "gelu":
        y = 0.5 * y * (1.0 + jnp.tanh(_GELU_C * (y + 0.044715 * y * y * y)))
    o_ref[...] = y.astype(o_ref.dtype)


def _dense_kernel(x_ref, w_ref, *rest, activation, has_bias, has_residual):
    """Tiled (M,N,K) matmul with f32 accumulator; bias/GELU/residual fused epilogue."""
    i = 0
    bias_ref = res_ref = None
    if has_bias:
        bias_ref = rest[i]; i += 1
    if has_residual:
        res_ref = rest[i]; i += 1
    o_ref = rest[i]
    acc_ref = rest[i + 1]

    @pl.when(pl.program_id(2) == 0)
    def _():
        acc_ref[...] = jnp.zeros_like(acc_ref)

    acc_ref[...] += jnp.dot(x_ref[...].astype(jnp.bfloat16),
                            w_ref[...].astype(jnp.bfloat16),
                            preferred_element_type=jnp.float32)

    @pl.when(pl.program_id(2) == pl.num_programs(2) - 1)
    def _():
        y = acc_ref[...]
        if has_bias:
            y = y + bias_ref[...]
        if activation == "gelu":
            y = 0.5 * y * (1.0 + jnp.tanh(_GELU_C * (y + 0.044715 * y * y * y)))
        if has_residual:
            y = y + res_ref[...].astype(jnp.float32)
        o_ref[...] = y.astype(o_ref.dtype)


def _flash_attn_kernel(q_ref, k_ref, v_ref, o_ref, m_ref, l_ref, acc_ref, *,
                       scale, tq, tk):
    """Flash-style causal attention over all heads of a Q tile; KV axis innermost.
    q_ref/k_ref/v_ref blocks: (tq, H, hd) / (tk, H, hd) bf16 straight from the qkv slab.
    Output written directly in the merged (tq, H, hd) layout."""
    qi = pl.program_id(1)
    ki = pl.program_id(2)

    @pl.when(ki == 0)
    def _():
        m_ref[...] = jnp.full_like(m_ref, NEG_BIG)
        l_ref[...] = jnp.zeros_like(l_ref)
        acc_ref[...] = jnp.zeros_like(acc_ref)

    q_first = qi * tq
    q_last = q_first + tq - 1
    k_first = ki * tk
    k_last = k_first + tk - 1
    fully_visible = k_last <= q_first
    fully_masked = k_first > q_last

    def update(apply_mask):
        q = jnp.transpose(q_ref[...], (1, 0, 2))        # (H, tq, hd) bf16
        k = jnp.transpose(k_ref[...], (1, 0, 2))        # (H, tk, hd) bf16
        v = jnp.transpose(v_ref[...], (1, 0, 2))        # (H, tk, hd) bf16
        # contract last axes directly (no explicit k.T materialization)
        s = jnp.einsum("hqd,hkd->hqk", q, k,
                       preferred_element_type=jnp.float32) * scale   # (H, tq, tk)
        if apply_mask:
            row = q_first + jax.lax.broadcasted_iota(jnp.int32, (1, tq, tk), 1)
            col = k_first + jax.lax.broadcasted_iota(jnp.int32, (1, tq, tk), 2)
            s = jnp.where(col <= row, s, NEG_BIG)
        m_prev = m_ref[...]                              # (H, tq, 1)
        m_new = jnp.maximum(m_prev, jnp.max(s, axis=-1, keepdims=True))
        alpha = jnp.exp(m_prev - m_new)
        p = jnp.exp(s - m_new)                           # (H, tq, tk)
        l_ref[...] = alpha * l_ref[...] + jnp.sum(p, axis=-1, keepdims=True)
        acc_ref[...] = alpha * acc_ref[...] + jnp.einsum(
            "hqk,hkd->hqd", p.astype(v.dtype), v,
            preferred_element_type=jnp.float32)          # (H, tq, hd)
        m_ref[...] = m_new

    # Fully-visible blocks skip the mask entirely; diagonal-straddling blocks mask;
    # fully-masked blocks skip everything (their DMA is avoided via clamped index_map).
    @pl.when(fully_visible)
    def _():
        update(apply_mask=False)

    @pl.when(jnp.logical_and(jnp.logical_not(fully_visible),
                             jnp.logical_not(fully_masked)))
    def _():
        update(apply_mask=True)

    @pl.when(ki == pl.num_programs(2) - 1)
    def _():
        out = acc_ref[...] * pl.reciprocal(l_ref[...], approx=True)   # (H, tq, hd)
        o_ref[...] = jnp.transpose(out, (1, 0, 2)).astype(o_ref.dtype)


# ------------------------------ kernel wrappers ------------------------------

def ln_dense(x, gamma, beta, w, bias=None, activation=None, out_dtype=jnp.bfloat16,
             tm_target=512, tn_target=512):
    """Fused LayerNorm + dense, tiled over (M, N); K (model dim) kept whole for the LN."""
    m, kdim = x.shape
    n = w.shape[1]
    tm, mp = _choose_tile(m, tm_target)
    tn, np_ = _choose_tile(n, tn_target)
    if mp != m:
        x = jnp.pad(x, ((0, mp - m), (0, 0)))
    if np_ != n:
        w = jnp.pad(w, ((0, 0), (0, np_ - n)))
        if bias is not None:
            bias = jnp.pad(bias, (0, np_ - n))

    in_specs = [
        pl.BlockSpec((tm, kdim), lambda i, j: (i, 0)),
        pl.BlockSpec((1, kdim), lambda i, j: (0, 0)),
        pl.BlockSpec((1, kdim), lambda i, j: (0, 0)),
        pl.BlockSpec((kdim, tn), lambda i, j: (0, j)),
    ]
    args = [x,
            gamma.reshape(1, kdim).astype(jnp.float32),
            beta.reshape(1, kdim).astype(jnp.float32),
            w]
    if bias is not None:
        in_specs.append(pl.BlockSpec((1, tn), lambda i, j: (0, j)))
        args.append(bias.reshape(1, np_).astype(jnp.float32))

    kern = functools.partial(_ln_dense_kernel, activation=activation,
                             has_bias=bias is not None)
    flops = 2 * mp * np_ * kdim
    trans = mp * np_ if activation == "gelu" else 0
    bytes_accessed = int(x.size * x.dtype.itemsize + w.size * w.dtype.itemsize
                         + mp * np_ * jnp.dtype(out_dtype).itemsize)

    out = pl.pallas_call(
        kern,
        out_shape=jax.ShapeDtypeStruct((mp, np_), out_dtype),
        grid=(mp // tm, np_ // tn),
        in_specs=in_specs,
        out_specs=pl.BlockSpec((tm, tn), lambda i, j: (i, j)),
        scratch_shapes=[pltpu.VMEM((tm, kdim), jnp.bfloat16)],   # cached LN(x) per M-strip
        compiler_params=pltpu.CompilerParams(
            # N axis must stay in-order ("arbitrary"): j>0 tiles reuse the LN scratch.
            dimension_semantics=("parallel", "arbitrary"),
            vmem_limit_bytes=VMEM_LIMIT),
        cost_estimate=pl.CostEstimate(flops=int(flops), transcendentals=int(trans),
                                      bytes_accessed=bytes_accessed),
    )(*args)
    if mp != m or np_ != n:
        out = out[:m, :n]
    return out


def dense(x, w, bias=None, residual=None, activation=None, out_dtype=jnp.bfloat16,
          tm_target=512, tn_target=1024, tk_target=1024):
    """Tiled K-looped matmul with fused bias / GELU / residual epilogue (bf16 MXU, f32 acc)."""
    m, kdim = x.shape
    n = w.shape[1]
    tm, mp = _choose_tile(m, tm_target)
    tn, np_ = _choose_tile(n, tn_target)
    tk, kp = _choose_tile(kdim, tk_target)
    if mp != m or kp != kdim:
        x = jnp.pad(x, ((0, mp - m), (0, kp - kdim)))
    if kp != kdim or np_ != n:
        w = jnp.pad(w, ((0, kp - kdim), (0, np_ - n)))
    if bias is not None and np_ != n:
        bias = jnp.pad(bias, (0, np_ - n))
    if residual is not None and (mp != m or np_ != n):
        residual = jnp.pad(residual, ((0, mp - m), (0, np_ - n)))

    in_specs = [
        pl.BlockSpec((tm, tk), lambda i, j, l: (i, l)),
        pl.BlockSpec((tk, tn), lambda i, j, l: (l, j)),
    ]
    args = [x, w]
    if bias is not None:
        in_specs.append(pl.BlockSpec((1, tn), lambda i, j, l: (0, j)))
        args.append(bias.reshape(1, np_).astype(jnp.float32))
    if residual is not None:
        in_specs.append(pl.BlockSpec((tm, tn), lambda i, j, l: (i, j)))
        args.append(residual)

    kern = functools.partial(_dense_kernel, activation=activation,
                             has_bias=bias is not None,
                             has_residual=residual is not None)
    flops = 2 * mp * np_ * kp
    trans = mp * np_ if activation == "gelu" else 0
    bytes_accessed = int(x.size * x.dtype.itemsize + w.size * w.dtype.itemsize
                         + mp * np_ * jnp.dtype(out_dtype).itemsize)

    out = pl.pallas_call(
        kern,
        out_shape=jax.ShapeDtypeStruct((mp, np_), out_dtype),
        grid=(mp // tm, np_ // tn, kp // tk),
        in_specs=in_specs,
        out_specs=pl.BlockSpec((tm, tn), lambda i, j, l: (i, j)),
        scratch_shapes=[pltpu.VMEM((tm, tn), jnp.float32)],
        compiler_params=pltpu.CompilerParams(
            dimension_semantics=("parallel", "parallel", "arbitrary"),
            vmem_limit_bytes=VMEM_LIMIT),
        cost_estimate=pl.CostEstimate(flops=int(flops), transcendentals=int(trans),
                                      bytes_accessed=bytes_accessed),
    )(*args)
    if mp != m or np_ != n:
        out = out[:m, :n]
    return out


def causal_attention(qkv, tq_target=256, tk_target=256):
    """qkv: (B, S, 3, H, hd) bf16 (a free reshape of the (B*S, 3D) qkv projection)
    -> (B, S, H, hd) bf16 in the merged layout (free reshape back to (B*S, D)).
    Head split/merge is done purely via BlockSpec index maps — no XLA transposes."""
    B, S, _, H, hd = qkv.shape
    scale = 1.0 / math.sqrt(hd)
    tq = _pick_seq_tile(S, tq_target)
    tk = _pick_seq_tile(S, tk_target)
    kern = functools.partial(_flash_attn_kernel, scale=scale, tq=tq, tk=tk)

    def q_index(b, qi, ki):
        return (b, qi, 0, 0, 0)

    def kv_index(which):
        def idx(b, qi, ki):
            # Clamp so causally-skipped KV blocks reuse the previous block (no extra DMA).
            return (b, jnp.minimum(ki, (qi * tq + tq - 1) // tk), which, 0, 0)
        return idx

    q_spec = pl.BlockSpec((None, tq, None, H, hd), q_index)
    k_spec = pl.BlockSpec((None, tk, None, H, hd), kv_index(1))
    v_spec = pl.BlockSpec((None, tk, None, H, hd), kv_index(2))

    itemsize = qkv.dtype.itemsize
    # TODO(synk): fold (qi, ki) into a triangular 1-D grid (PrefetchScalarGridSpec) to
    #             remove the ~half-empty grid steps; currently they are compute/DMA-free
    #             but still pay per-step pipeline overhead.
    # TODO(synk): for hd=64 on v6e/v7x, pack 2 heads per MXU contraction to improve fill.
    return pl.pallas_call(
        kern,
        out_shape=jax.ShapeDtypeStruct((B, S, H, hd), qkv.dtype),
        grid=(B, S // tq, S // tk),
        in_specs=[q_spec, k_spec, v_spec],
        out_specs=pl.BlockSpec((None, tq, H, hd), lambda b, qi, ki: (b, qi, 0, 0)),
        scratch_shapes=[pltpu.VMEM((H, tq, 1), jnp.float32),
                        pltpu.VMEM((H, tq, 1), jnp.float32),
                        pltpu.VMEM((H, tq, hd), jnp.float32)],
        compiler_params=pltpu.CompilerParams(
            dimension_semantics=("parallel", "parallel", "arbitrary"),
            vmem_limit_bytes=VMEM_LIMIT),
        cost_estimate=pl.CostEstimate(
            flops=int(2 * 2 * B * H * S * S * hd) // 2,      # ~halved by causal skip
            transcendentals=int(B * H * S * S) // 2,
            bytes_accessed=int(4 * B * S * H * hd * itemsize)),
    )(qkv, qkv, qkv)


# ------------------------------- model forward -------------------------------

def simple_language_model_forward(params, input_ids, attention_mask=None):
    # TODO(synk): attention_mask (padding) path not implemented; matches the
    #             attention_mask=None call used here (eval mode, no dropout).
    B, S = input_ids.shape
    D = params["wte"].shape[1]
    H = params["n_head"]
    hd = D // H

    # token + position embeddings (gather stays in plain JAX)
    h = jnp.take(params["wte"], input_ids, axis=0) + params["wpe"][:S][None, :, :]
    x = h.reshape(B * S, D).astype(jnp.bfloat16)            # residual stream in bf16

    for blk in params["blocks"]:
        # --- attention sub-block: LN1 fused into the qkv projection ---
        qkv = ln_dense(x, blk["ln1_g"], blk["ln1_b"], blk["c_attn_w"],
                       bias=blk["c_attn_b"], out_dtype=jnp.bfloat16,
                       tm_target=512, tn_target=512)         # (B*S, 3D) bf16
        # (B*S, 3D) -> (B, S, 3, H, hd) is a contiguous reshape (free); head split/merge
        # is handled inside the attention kernel's BlockSpecs.
        attn = causal_attention(qkv.reshape(B, S, 3, H, hd))  # (B, S, H, hd) bf16
        attn = attn.reshape(B * S, D)                         # free reshape (merged layout)
        # attn output projection with residual add fused into the epilogue
        x = dense(attn, blk["attn_proj_w"], bias=blk["attn_proj_b"],
                  residual=x, out_dtype=jnp.bfloat16,
                  tm_target=512, tn_target=1024, tk_target=1024)
        # --- MLP sub-block: LN2 fused into fc, GELU in epilogue ---
        hmid = ln_dense(x, blk["ln2_g"], blk["ln2_b"], blk["fc_w"],
                        bias=blk["fc_b"], activation="gelu",
                        out_dtype=jnp.bfloat16,
                        tm_target=512, tn_target=1024)        # (B*S, 4D) bf16
        x = dense(hmid, blk["mlp_proj_w"], bias=blk["mlp_proj_b"],
                  residual=x, out_dtype=jnp.bfloat16,
                  tm_target=512, tn_target=1024, tk_target=1024)

    # final LN fused into the lm_head projection (no bias); vocab padded to a
    # lane-dense multiple of the tile inside ln_dense and sliced back.
    # TODO(synk): emit bf16 logits (or fuse log-softmax) on v5e to halve the logits write.
    logits = ln_dense(x, params["lnf_g"], params["lnf_b"], params["lm_head_w"],
                      bias=None, out_dtype=jnp.float32,
                      tm_target=512, tn_target=512)            # (B*S, V) f32
    return logits.reshape(B, S, -1)


# ------------------------------- param init ----------------------------------

def init_params(key, *, vocab_size, n_positions, n_embd, n_head, n_layer):
    keys = jax.random.split(key, 3 + n_layer)
    std = 0.02

    def w(k, shape):   # MXU weights stored in bf16
        return (jax.random.normal(k, shape, jnp.float32) * std).astype(jnp.bfloat16)

    params = {
        "n_head": n_head,
        "wte": jax.random.normal(keys[0], (vocab_size, n_embd), jnp.float32) * std,
        "wpe": jax.random.normal(keys[1], (n_positions, n_embd), jnp.float32) * std,
        "lnf_g": jnp.ones((n_embd,), jnp.float32),
        "lnf_b": jnp.zeros((n_embd,), jnp.float32),
        # lm_head: nn.Linear(n_embd, vocab, bias=False); stored transposed -> (n_embd, vocab)
        "lm_head_w": w(keys[2], (n_embd, vocab_size)),
        "blocks": [],
    }
    for L in range(n_layer):
        k0, k1, k2, k3 = jax.random.split(keys[3 + L], 4)
        params["blocks"].append({
            "ln1_g": jnp.ones((n_embd,), jnp.float32),
            "ln1_b": jnp.zeros((n_embd,), jnp.float32),
            "c_attn_w": w(k0, (n_embd, 3 * n_embd)),
            "c_attn_b": jnp.zeros((3 * n_embd,), jnp.float32),
            "attn_proj_w": w(k1, (n_embd, n_embd)),
            "attn_proj_b": jnp.zeros((n_embd,), jnp.float32),
            "ln2_g": jnp.ones((n_embd,), jnp.float32),
            "ln2_b": jnp.zeros((n_embd,), jnp.float32),
            "fc_w": w(k2, (n_embd, 4 * n_embd)),
            "fc_b": jnp.zeros((4 * n_embd,), jnp.float32),
            "mlp_proj_w": w(k3, (4 * n_embd, n_embd)),
            "mlp_proj_b": jnp.zeros((n_embd,), jnp.float32),
        })
    return params


# ---------------------------------- main --------------------------------------

if __name__ == "__main__":
    # small GPT-2-style config
    vocab_size, n_positions, n_embd, n_head, n_layer = 64, 16, 32, 4, 2
    batch, seq = 2, 8

    key = jax.random.PRNGKey(0)
    pkey, ikey = jax.random.split(key)
    params = init_params(pkey, vocab_size=vocab_size, n_positions=n_positions,
                         n_embd=n_embd, n_head=n_head, n_layer=n_layer)
    input_ids = jax.random.randint(ikey, (batch, seq), 0, vocab_size, dtype=jnp.int32)

    logits = simple_language_model_forward(params, input_ids, attention_mask=None)
    logits = jax.block_until_ready(logits)

    assert logits.shape == (batch, seq, vocab_size)
    assert logits.dtype == jnp.float32
    assert bool(jnp.all(jnp.isfinite(logits)))
    print("KERNEL_OK")
</pallas_src>

<mosaic_0001>
module attributes {stable_mosaic.version = 11 : i64} {
  func.func @_ln_dense_kernel(%arg0: i32, %arg1: i32, %arg2: memref<16x32xbf16, #tpu.memory_space<vmem>>, %arg3: memref<1x32xf32, #tpu.memory_space<vmem>>, %arg4: memref<1x32xf32, #tpu.memory_space<vmem>>, %arg5: memref<32x96xbf16, #tpu.memory_space<vmem>>, %arg6: memref<1x96xf32, #tpu.memory_space<vmem>>, %arg7: memref<16x96xbf16, #tpu.memory_space<vmem>>, %arg8: memref<16x32xbf16, #tpu.memory_space<vmem>>) attributes {dimension_semantics = [#tpu.dimension_semantics<parallel>, #tpu.dimension_semantics<arbitrary>], iteration_bounds = array<i64: 1, 1>, scalar_prefetch = 0 : i64, scratch_operands = 1 : i64, tpu.core_type = #tpu.core_type<tc>, window_params = [{transform_indices = @transform_0, window_bounds = array<i64: 16, 32>}, {pipeline_mode = #tpu.pipeline_mode<synchronous>, transform_indices = @transform_1, window_bounds = array<i64: 1, 32>}, {pipeline_mode = #tpu.pipeline_mode<synchronous>, transform_indices = @transform_2, window_bounds = array<i64: 1, 32>}, {transform_indices = @transform_3, window_bounds = array<i64: 32, 96>}, {transform_indices = @transform_4, window_bounds = array<i64: 1, 96>}, {transform_indices = @transform_5, window_bounds = array<i64: 16, 96>}]} {
    %c0_i32 = arith.constant 0 : i32
    %0 = arith.cmpi eq, %arg1, %c0_i32 : i32
    %1 = arith.extui %0 : i1 to i32
    %c0_i32_0 = arith.constant 0 : i32
    %2 = arith.cmpi ne, %1, %c0_i32_0 : i32
    scf.if %2 {
      %c0_8 = arith.constant 0 : index
      %c0_9 = arith.constant 0 : index
      %11 = vector.load %arg2[%c0_8, %c0_9] : memref<16x32xbf16, #tpu.memory_space<vmem>>, vector<16x32xbf16>
      %12 = arith.extf %11 : vector<16x32xbf16> to vector<16x32xf32>
      %cst_10 = arith.constant dense<0.000000e+00> : vector<16xf32>
      %13 = vector.multi_reduction <add>, %12, %cst_10 [1] : vector<16x32xf32> to vector<16xf32>
      %14 = vector.shape_cast %13 : vector<16xf32> to vector<16x1xf32>
      %cst_11 = arith.constant 3.200000e+01 : f32
      %15 = vector.broadcast %cst_11 : f32 to vector<16x1xf32>
      %16 = arith.divf %14, %15 : vector<16x1xf32>
      %17 = arith.mulf %12, %12 : vector<16x32xf32>
      %cst_12 = arith.constant dense<0.000000e+00> : vector<16xf32>
      %18 = vector.multi_reduction <add>, %17, %cst_12 [1] : vector<16x32xf32> to vector<16xf32>
      %19 = vector.shape_cast %18 : vector<16xf32> to vector<16x1xf32>
      %cst_13 = arith.constant 3.200000e+01 : f32
      %20 = vector.broadcast %cst_13 : f32 to vector<16x1xf32>
      %21 = arith.divf %19, %20 : vector<16x1xf32>
      %22 = arith.mulf %16, %16 : vector<16x1xf32>
      %23 = arith.subf %21, %22 : vector<16x1xf32>
      %24 = vector.broadcast %16 : vector<16x1xf32> to vector<16x32xf32>
      %25 = arith.subf %12, %24 : vector<16x32xf32>
      %cst_14 = arith.constant 9.99999974E-6 : f32
      %26 = vector.broadcast %cst_14 : f32 to vector<16x1xf32>
      %27 = arith.addf %23, %26 : vector<16x1xf32>
      %28 = math.rsqrt %27 : vector<16x1xf32>
      %29 = vector.broadcast %28 : vector<16x1xf32> to vector<16x32xf32>
      %30 = arith.mulf %25, %29 : vector<16x32xf32>
      %c0_15 = arith.constant 0 : index
      %c0_16 = arith.constant 0 : index
      %31 = vector.load %arg3[%c0_15, %c0_16] : memref<1x32xf32, #tpu.memory_space<vmem>>, vector<1x32xf32>
      %32 = vector.broadcast %31 : vector<1x32xf32> to vector<16x32xf32>
      %33 = arith.mulf %30, %32 : vector<16x32xf32>
      %c0_17 = arith.constant 0 : index
      %c0_18 = arith.constant 0 : index
      %34 = vector.load %arg4[%c0_17, %c0_18] : memref<1x32xf32, #tpu.memory_space<vmem>>, vector<1x32xf32>
      %35 = vector.broadcast %34 : vector<1x32xf32> to vector<16x32xf32>
      %36 = arith.addf %33, %35 : vector<16x32xf32>
      %37 = arith.truncf %36 : vector<16x32xf32> to vector<16x32xbf16>
      %c0_19 = arith.constant 0 : index
      %c0_20 = arith.constant 0 : index
      %38 = vector.load %arg8[%c0_19, %c0_20] : memref<16x32xbf16, #tpu.memory_space<vmem>>, vector<16x32xbf16>
      tpu.vector_store %arg8[%c0_19, %c0_20], %37 {strides = array<i32>} : memref<16x32xbf16, #tpu.memory_space<vmem>>, vector<16x32xbf16>,
    } else {
    }
    %c0 = arith.constant 0 : index
    %c0_1 = arith.constant 0 : index
    %3 = vector.load %arg8[%c0, %c0_1] : memref<16x32xbf16, #tpu.memory_space<vmem>>, vector<16x32xbf16>
    %c0_2 = arith.constant 0 : index
    %c0_3 = arith.constant 0 : index
    %4 = vector.load %arg5[%c0_2, %c0_3] : memref<32x96xbf16, #tpu.memory_space<vmem>>, vector<32x96xbf16>
    %cst = arith.constant dense<0.000000e+00> : vector<16x96xf32>
    %5 = tpu.matmul %3, %4, %cst {dimension_numbers = #tpu.dot_dimension_numbers<[1], [0], [0], [1], [0, 0, 1, 1], [], []>} : vector<16x32xbf16>, vector<32x96xbf16>, vector<16x96xf32> -> vector<16x96xf32>
    %c0_4 = arith.constant 0 : index
    %c0_5 = arith.constant 0 : index
    %6 = vector.load %arg6[%c0_4, %c0_5] : memref<1x96xf32, #tpu.memory_space<vmem>>, vector<1x96xf32>
    %7 = vector.broadcast %6 : vector<1x96xf32> to vector<16x96xf32>
    %8 = arith.addf %5, %7 : vector<16x96xf32>
    %9 = arith.truncf %8 : vector<16x96xf32> to vector<16x96xbf16>
    %c0_6 = arith.constant 0 : index
    %c0_7 = arith.constant 0 : index
    %10 = vector.load %arg7[%c0_6, %c0_7] : memref<16x96xbf16, #tpu.memory_space<vmem>>, vector<16x96xbf16>
    tpu.vector_store %arg7[%c0_6, %c0_7], %9 {strides = array<i32>} : memref<16x96xbf16, #tpu.memory_space<vmem>>, vector<16x96xbf16>,
    return
  }
  func.func @transform_0(%arg0: i32, %arg1: i32) -> (i32, i32) {
    %c0_i32 = arith.constant 0 : i32
    %c0_i32_0 = arith.constant 0 : i32
    return %arg0, %c0_i32 : i32, i32
  }
  func.func @transform_1(%arg0: i32, %arg1: i32) -> (i32, i32) {
    %c0_i32 = arith.constant 0 : i32
    %c0_i32_0 = arith.constant 0 : i32
    %c0_i32_1 = arith.constant 0 : i32
    return %c0_i32, %c0_i32_0 : i32, i32
  }
  func.func @transform_2(%arg0: i32, %arg1: i32) -> (i32, i32) {
    %c0_i32 = arith.constant 0 : i32
    %c0_i32_0 = arith.constant 0 : i32
    %c0_i32_1 = arith.constant 0 : i32
    return %c0_i32, %c0_i32_0 : i32, i32
  }
  func.func @transform_3(%arg0: i32, %arg1: i32) -> (i32, i32) {
    %c0_i32 = arith.constant 0 : i32
    %c0_i32_0 = arith.constant 0 : i32
    return %c0_i32, %arg1 : i32, i32
  }
  func.func @transform_4(%arg0: i32, %arg1: i32) -> (i32, i32) {
    %c0_i32 = arith.constant 0 : i32
    %c0_i32_0 = arith.constant 0 : i32
    return %c0_i32, %arg1 : i32, i32
  }
  func.func @transform_5(%arg0: i32, %arg1: i32) -> (i32, i32) {
    %c0_i32 = arith.constant 0 : i32
    return %arg0, %arg1 : i32, i32
  }
}

</mosaic_0001>

<llo_original>
// kernel: tpu_custom_call.1
$region0: #{tpu_custom_call.1}
  #allocation0 [shape = 'u32[]', space=smem, size = 0x4, offset = 0x4, fixed_abs, tag = 'smem constant byte address 0x4 - core index']
  #allocation1 [shape = 'u32[144,128]{1,0:T(1,128)}', space=vmem, size = 0x12000, scoped, tag = 'internal scratch']
  #allocation2 [shape = 'bf16[16,32]{1,0:T(8,128)(2,1)}', space=vmem, size = 0x1000, scoped, tag = 'scratch operand']
  %s0 = inlined_call_operand.hbm [shape: bf16[16,32], index: 0, kind: input, shape index: {}]
  %s1 = inlined_call_operand.vmem [shape: f32[1,32], index: 1, kind: input, shape index: {}]
  %s2 = inlined_call_operand.vmem [shape: f32[1,32], index: 2, kind: input, shape index: {}]
  %s3 = inlined_call_operand.hbm [shape: bf16[32,96], index: 3, kind: input, shape index: {}]
  %s4 = inlined_call_operand.vmem [shape: f32[1,96], index: 4, kind: input, shape index: {}]
  %s5 = inlined_call_operand.hbm [shape: bf16[16,96], index: 5, kind: output, shape index: {}]
  %s6 = sld [smem:[#allocation0]]
  $region42: #{tpu_custom_call.1} parent=0
    _
  %s8 = ssub.s32 1, %s6
  %s9 = scalar_select 0, %s8, %s6
  $region1: #{tpu_custom_call.1} parent=0
    #allocation3 [shape = 'u8[4096]{0}', space=vmem, size = 0x1000, scoped, tag = 'input window, operand 0, single buffered']
    #allocation4 [shape = 's32[1]{0}', space=sflag, size = 0x4, scoped, tag = 'scoped memory for tpu_custom_call.1']
    #allocation5 [shape = 's32[1]{0}', space=sflag, size = 0x4, scoped, tag = 'scoped memory for tpu_custom_call.1']
    #allocation6 [shape = 'u8[8192]{0}', space=vmem, size = 0x2000, scoped, tag = 'input window, operand 3, single buffered']
    #allocation7 [shape = 's32[1]{0}', space=sflag, size = 0x4, scoped, tag = 'scoped memory for tpu_custom_call.1']
    #allocation8 [shape = 'u8[4096]{0}', space=vmem, size = 0x1000, scoped, tag = 'output window, operand 0, single buffered']
    %10 = vsyncpa [#allocation4], 0
    %11 = vsyncpa [#allocation7], 0
    %12 = vsyncpa [#allocation5], 0
    // Predicated region
    $region2: #{tpu_custom_call.1} parent=1 // pred_check
      _
    $region3: #{tpu_custom_call.1} parent=1 // pred_check_branch
      %14 = sbr.rel (0) target = $region5
    $region4: #{tpu_custom_call.1} parent=1 // pred_region
      %s16 = ssub.s32 128, 128
      %17 = vsyncadd [#allocation4], %s16
      %s18 = sshll.u32 [#allocation3], 4
      %s19 = int_to_ptr.vmem [resolvable:$true] %s18
      %24 = dma.hbm_to_vmem [thread:$0]  %s0, 128, %s19, [#allocation4], 64, 64, 4
    $region5: #{tpu_custom_call.1} parent=1 // pred_fallthru
      _
    // Predicated region
    $region6: #{tpu_custom_call.1} parent=1 // pred_check
      _
    $region7: #{tpu_custom_call.1} parent=1 // pred_check_branch
      %26 = sbr.rel (0) target = $region9
    $region8: #{tpu_custom_call.1} parent=1 // pred_region
      _
    $region9: #{tpu_custom_call.1} parent=1 // pred_fallthru
      _
    // Predicated region
    $region10: #{tpu_custom_call.1} parent=1 // pred_check
      _
    $region11: #{tpu_custom_call.1} parent=1 // pred_check_branch
      %28 = sbr.rel (0) target = $region13
    $region12: #{tpu_custom_call.1} parent=1 // pred_region
      _
    $region13: #{tpu_custom_call.1} parent=1 // pred_fallthru
      _
    // Predicated region
    $region14: #{tpu_custom_call.1} parent=1 // pred_check
      _
    $region15: #{tpu_custom_call.1} parent=1 // pred_check_branch
      %30 = sbr.rel (0) target = $region17
    $region16: #{tpu_custom_call.1} parent=1 // pred_region
      %s32 = ssub.s32 256, 256
      %33 = vsyncadd [#allocation7], %s32
      %s34 = sshll.u32 [#allocation6], 4
      %s35 = int_to_ptr.vmem [resolvable:$true] %s34
      %40 = dma.hbm_to_vmem [thread:$0]  %s3, 256, %s35, [#allocation7], 64, 64, 4
    $region17: #{tpu_custom_call.1} parent=1 // pred_fallthru
      _
    // Predicated region
    $region18: #{tpu_custom_call.1} parent=1 // pred_check
      _
    $region19: #{tpu_custom_call.1} parent=1 // pred_check_branch
      %42 = sbr.rel (0) target = $region21
    $region20: #{tpu_custom_call.1} parent=1 // pred_region
      _
    $region21: #{tpu_custom_call.1} parent=1 // pred_fallthru
      _
    // Predicated region
    $region22: #{tpu_custom_call.1} parent=1 // pred_check
      _
    $region23: #{tpu_custom_call.1} parent=1 // pred_check_branch
      %44 = sbr.rel (0) target = $region25
    $region24: #{tpu_custom_call.1} parent=1 // pred_region
      %45 = dma.done [#allocation4], 128
    $region25: #{tpu_custom_call.1} parent=1 // pred_fallthru
      _
    // Predicated region
    $region26: #{tpu_custom_call.1} parent=1 // pred_check
      _
    $region27: #{tpu_custom_call.1} parent=1 // pred_check_branch
      %47 = sbr.rel (0) target = $region29
    $region28: #{tpu_custom_call.1} parent=1 // pred_region
      %48 = dma.done [#allocation7], 256
    $region29: #{tpu_custom_call.1} parent=1 // pred_fallthru
      _
    %p50 = scmp.eq.s32.totalorder 0, 0
    // Predicated region
    $region30: #{tpu_custom_call.1} parent=1 // pred_check
      %p51 = pneg %p50
    $region31: #{tpu_custom_call.1} parent=1 // pred_check_branch
      %53 = sbr.rel (%p51) target = $region33
    $region32: #{tpu_custom_call.1} parent=1 // pred_region
      %v54 = vld [vmem:[#allocation3] sm:$0xf]
      %v55 = vld [vmem:[#allocation3 + $0x4] sm:$0xf]
      %v56 = vunpack.c.l.bf16 %v54
      %v57 = vunpack.c.l.bf16 %v55
      %vm58 = vcmask 261120
      %v59 = vsel %vm58, %v56, 0.0
      %60 = vadd.xlane.f32.xlu0 %v59
      %v61 = vpop.xlane.xlu0 %60
      %v62 = vsel %vm58, %v57, 0.0
      %63 = vadd.xlane.f32.xlu0 %v62
      %v64 = vpop.xlane.xlu0 %63
      %v65 = vrcp.pop 32.0
      %v66 = vmul.f32 %v61, %v65
      %v67 = vmul.f32 %v64, %v65
      %v68 = vmul.f32 %v56, %v56
      %v69 = vmul.f32 %v57, %v57
      %v70 = vsel %vm58, %v68, 0.0
      %71 = vadd.xlane.f32.xlu0 %v70
      %v72 = vpop.xlane.xlu0 %71
      %v73 = vsel %vm58, %v69, 0.0
      %74 = vadd.xlane.f32.xlu0 %v73
      %v75 = vpop.xlane.xlu0 %74
      %v76 = vmul.f32 %v72, %v65
      %v77 = vmul.f32 %v75, %v65
      %v78 = vmul.f32 %v66, %v66
      %v79 = vmul.f32 %v67, %v67
      %v80 = vsub.f32 %v76, %v78
      %v81 = vsub.f32 %v77, %v79
      %v82 = vsub.f32 %v56, %v66
      %v83 = vsub.f32 %v57, %v67
      %v84 = vadd.f32 %v80, 1e-05
      %v85 = vadd.f32 %v81, 1e-05
      %v86 = vrsqrt.pop %v84
      %v87 = vrsqrt.pop %v85
      %v88 = vmul.f32 %v82, %v86
      %v89 = vmul.f32 %v83, %v87
      %v90 = vld [vmem:[%s1] sm:$0x1]
      %v92 = vlaneseq
      %v93 = vshrl.u32 %v92, 7
      %v94 = vsub.s32 0, %v93
      %v95 = vrot.slane %v90, %v94
      %v97 = vmul.f32 %v88, %v95
      %v98 = vmul.f32 %v89, %v95
      %v99 = vld [vmem:[%s2] sm:$0x1]
      %v101 = vlaneseq
      %v102 = vshrl.u32 %v101, 7
      %v103 = vsub.s32 0, %v102
      %v104 = vrot.slane %v99, %v103
      %v106 = vadd.f32 %v97, %v104
      %v107 = vadd.f32 %v98, %v104
      %v108 = vpack.c.bf16 %v107, %v106
      %v110 = vunpack.c.l.b16 %v108
      %v111 = vunpack.c.h.b16 %v108
      %v112 = vpack.c.b16 %v110, %v110
      %v113 = vpack.c.b16 %v111, %v111
      %vm116 = vcmask 257024
      %117 = vst.msk [vmem:[#allocation2] sm:$0xf] %vm116, %v112
      %118 = vst.msk [vmem:[#allocation2 + $0x4] sm:$0xf] %vm116, %v113
    $region33: #{tpu_custom_call.1} parent=1 // pred_fallthru
      _
    %v119 = vld [vmem:[#allocation2] sm:$0xf]
    %v120 = vld [vmem:[#allocation2 + $0x4] sm:$0xf]
    %v121 = vld [vmem:[#allocation6] sm:$0xf]
    %v122 = vld [vmem:[#allocation6 + $0x4] sm:$0xf]
    %v123 = vld [vmem:[#allocation6 + $0x8] sm:$0xf]
    %v124 = vld [vmem:[#allocation6 + $0xc] sm:$0xf]
    %v125 = vld [vmem:[%s4] sm:$0x1]
    %v127 = vlaneseq
    %v128 = vshrl.u32 %v127, 7
    %v129 = vsub.s32 0, %v128
    %v130 = vrot.slane %v125, %v129
    %v134 = vunpack.c.l.b16 %v119
    %v135 = vunpack.c.l.b16 %v120
    %v136 = vpack.c.b16 %v135, %v134
    %v141 = vunpack.c.l.b16 %v121
    %v142 = vunpack.c.l.b16 %v122
    %v143 = vunpack.c.l.b16 %v123
    %v144 = vunpack.c.l.b16 %v124
    %v145 = vpack.c.b16 %v142, %v141
    %v146 = vpack.c.b16 %v144, %v143
    %vm149 = vcmask 261120
    %v151 = vsel %vm149, %v136, 0
    %153 = vmatprep.subr.bf16.mxu0 0
    %154 = vmatpush1.bf16.msra.mxu0 0
    %155 = vmatprep.subr.bf16.mxu0 0
    %156 = vmatpush1.bf16.msra.mxu0 0
    %157 = vmatprep.subr.bf16.mxu0 0
    %158 = vmatpush1.bf16.msra.mxu0 0
    %159 = vmatprep.subr.bf16.mxu0 0
    %160 = vmatpush1.bf16.msra.mxu0 0
    %161 = vmatprep.subr.bf16.mxu0 0
    %162 = vmatpush1.bf16.msra.mxu0 0
    %163 = vmatprep.subr.bf16.mxu0 0
    %164 = vmatpush1.bf16.msra.mxu0 0
    %165 = vmatprep.subr.bf16.mxu0 0
    %166 = vmatpush1.bf16.msra.mxu0 %v146
    %167 = vmatprep.subr.bf16.mxu0 0
    %168 = vmatpush1.bf16.msra.mxu0 %v145
    %169 = vmatprep.subr.bf16.mxu0 0
    %170 = vmatpush2.bf16.msra.mxu0 0
    %171 = vmatprep.subr.bf16.mxu0 0
    %172 = vmatpush2.bf16.msra.mxu0 0
    %173 = vmatprep.subr.bf16.mxu0 0
    %174 = vmatpush2.bf16.msra.mxu0 0
    %175 = vmatprep.subr.bf16.mxu0 0
    %176 = vmatpush2.bf16.msra.mxu0 0
    %177 = vmatprep.subr.bf16.mxu0 0
    %178 = vmatpush2.bf16.msra.mxu0 0
    %179 = vmatprep.subr.bf16.mxu0 0
    %180 = vmatpush2.bf16.msra.mxu0 0
    %181 = vmatprep.subr.bf16.mxu0 0
    %182 = vmatpush2.bf16.msra.mxu0 0
    %183 = vmatprep.subr.bf16.mxu0 0
    %184 = vmatpush2.bf16.msra.mxu0 0
    %185 = vmatprep.mubr.bf16.mxu0 0
    %186 = vmatmul.mubr.bf16.gmra.mxu0 %v151
    %v187 = vpop.f32.mrf.mxu0
    %v188 = vadd.f32 %v130, %v187
    %v189 = vpop.f32.mrf.mxu0
    %v190 = vpop.f32.mrf.mxu0
    %v191 = vadd.f32 %v130, %v190
    %v192 = vpop.f32.mrf.mxu0
    %193 = vdwg.mxu0
    %v194 = vpack.c.bf16 %v191, %v188
    %v196 = vunpack.c.l.b16 %v194
    %v197 = vunpack.c.h.b16 %v194
    %v198 = vpack.c.b16 %v196, %v196
    %v199 = vpack.c.b16 %v197, %v197
    %vm202 = vcmask 781312
    %203 = vst.msk [vmem:[#allocation8] sm:$0xf] %vm202, %v198
    %204 = vst.msk [vmem:[#allocation8 + $0x4] sm:$0xf] %vm202, %v199
    // Predicated region
    $region34: #{tpu_custom_call.1} parent=1 // pred_check
      _
    $region35: #{tpu_custom_call.1} parent=1 // pred_check_branch
      %206 = sbr.rel (0) target = $region37
    $region36: #{tpu_custom_call.1} parent=1 // pred_region
      %s208 = ssub.s32 128, 128
      %209 = vsyncadd [#allocation5], %s208
      %s210 = sshll.u32 [#allocation8], 4
      %s211 = int_to_ptr.vmem [resolvable:$true] %s210
      %216 = dma.vmem_to_hbm [thread:$0]  %s211, 128, %s5, [#allocation5], 64, 64, 4
    $region37: #{tpu_custom_call.1} parent=1 // pred_fallthru
      _
    // Predicated region
    $region38: #{tpu_custom_call.1} parent=1 // pred_check
      _
    $region39: #{tpu_custom_call.1} parent=1 // pred_check_branch
      %218 = sbr.rel (0) target = $region41
    $region40: #{tpu_custom_call.1} parent=1 // pred_region
      %219 = dma.done [#allocation5], 128
    $region41: #{tpu_custom_call.1} parent=1 // pred_fallthru
      _
    %220 = vsyncpa [#allocation4], 1
    %221 = vsyncpa [#allocation7], 1
    %222 = vsyncpa [#allocation5], 1

</llo_original>
